<compile_context>
chip_gen: v5e
topology: v5e:2x2
jax: 0.10.0
libtpu: 0.0.40
codegen_flags: <defaults>
</compile_context>

<pallas_src>
import functools

import numpy as np
import jax
import jax.numpy as jnp
from jax.experimental import pallas as pl
from jax.experimental.pallas import tpu as pltpu

_LANES = 128
# 4096 rows x 128 lanes x 4 B = 2 MiB per stream per pipeline buffer.  With at
# most 4 f32 streams x 2 buffers that is 16 MiB of pipeline VMEM plus a fixed
# 256 KiB accumulator -- inside the 32 MiB scoped budget on every generation,
# and 2 MiB steps amortise the ~0.35 us per-step grid/DMA overhead to ~5% of
# the HBM streaming time (vs 12-35% at 1024 rows).
_TARGET_TILE_ROWS = 4096
_ACC_ROWS = 512  # fixed-size accumulator, decoupled from tile_rows

# TODO(synk): v7x-only follow-ups: (a) bump _TARGET_TILE_ROWS to 8192 (3.2 TB/s
# HBM makes the per-step overhead dominant at 2 MiB steps; 64 MiB VMEM still
# fits 2 streams x 2 buffers x 4 MiB) and (b) shard the streaming grid axis
# across the 2 TensorCores (leading size-2 "parallel" axis, per-core
# accumulator + per-core partial-sum output row combined in the wrapper).
# v5e/v6e have a single TensorCore, so neither applies there.


def _probe_complex_bitcast():
    """True iff this backend supports a zero-copy complex64 -> f32 view."""
    try:
        got = jax.jit(
            lambda c: jax.lax.bitcast_convert_type(c, jnp.float32)
        )(jnp.array([1.0 + 2.0j], dtype=jnp.complex64))
        return got.shape == (1, 2) and bool(
            jnp.allclose(got, jnp.array([[1.0, 2.0]], jnp.float32)))
    except Exception:  # trace- or compile-time rejection -> planar fallback
        return False


_HAS_COMPLEX_BITCAST = _probe_complex_bitcast()


def _vae_loss_kernel(n_pairs, rows_total, inv_n_complex, mask_tail, *refs):
    kw_ref = refs[0]
    streams = refs[1:1 + 2 * n_pairs]                 # pairwise: (x_s, recon_s)
    (mur_ref, mui_ref, sig_ref, dlr_ref, dli_ref,
     out_ref, acc_ref) = refs[1 + 2 * n_pairs:]

    step = pl.program_id(0)
    tile_rows = streams[0].shape[0]
    acc_rows = acc_ref.shape[0]

    @pl.when(step == 0)
    def _init():
        acc_ref[...] = jnp.zeros_like(acc_ref)

    # ---- streaming |x - recon|^2 partials: pure VPU, hides under the DMAs ---
    sq = None
    for p in range(n_pairs):
        d = streams[2 * p][...] - streams[2 * p + 1][...]
        sq = d * d if sq is None else sq + d * d

    def _accumulate(vals):
        # Fold the (tile_rows, 128) tile into the fixed (acc_rows, 128)
        # accumulator with element-wise adds only (no per-step XLU reduce).
        part = vals[0:acc_rows, :]
        for j in range(1, tile_rows // acc_rows):
            part = part + vals[j * acc_rows:(j + 1) * acc_rows, :]
        acc_ref[...] += part

    if not mask_tail:          # static: the grid tiles the rows exactly
        _accumulate(sq)
    else:
        last = pl.num_programs(0) - 1

        @pl.when(step != last)
        def _full_tile():
            _accumulate(sq)

        @pl.when(step == last)
        def _partial_tail():
            # Pallas does NOT zero-fill the out-of-range part of a partial edge
            # block: zero the garbage rows before accumulating (VPU-only, and
            # only paid on the single tail step).
            row = jax.lax.broadcasted_iota(jnp.int32, sq.shape, 0)
            ok = (step * tile_rows + row) < rows_total
            _accumulate(jnp.where(ok, sq, 0.0))

    @pl.when(step == pl.num_programs(0) - 1)
    def _finalize():
        # single cross-lane/sublane reduce of the accumulator, done once
        recon = jnp.sum(acc_ref[...]) * inv_n_complex

        # ---- KL divergence (complex Gaussian with pseudo-covariance delta) --
        mur = mur_ref[...]
        mui = mui_ref[...]
        sig = sig_ref[...]
        dlr = dlr_ref[...]
        dli = dli_ref[...]

        mur2 = mur * mur
        mui2 = mui * mui
        abs_mu_sq = mur2 + mui2
        # (1j*mu)^2 = -(mu^2);  Re(delta * (1j*mu)^2)
        #   = -dlr*(mur^2 - mui^2) + 2*dli*mur*mui
        re_term = -dlr * (mur2 - mui2) + 2.0 * dli * (mur * mui)
        denom = sig * sig - (dlr * dlr + dli * dli)
        term = (sig * (1.0 + abs_mu_sq) + re_term) / denom + 0.5 * jnp.log(denom)

        B = mur_ref.shape[0]
        D = mur_ref.shape[1]
        kl = (jnp.sum(term) - float(D)) * (1.0 / float(D * B))

        inv_bd = 1.0 / float(B * D)
        kw = kw_ref[0]
        out_ref[0] = recon + kw * kl
        out_ref[1] = recon
        out_ref[2] = kl
        out_ref[3] = jnp.sum(mur) * inv_bd
        out_ref[4] = jnp.sum(mui) * inv_bd
        out_ref[5] = jnp.sum(sig) * inv_bd
        out_ref[6] = jnp.sum(dlr) * inv_bd
        out_ref[7] = jnp.sum(dli) * inv_bd


def _to_rows(stream_f32):
    """Flatten an f32 stream to a lane-dense (rows, 128) view.

    Pads (i.e. copies) only when the flat length is not already a multiple of
    128 -- it is a plain metadata reshape otherwise.
    """
    flat = stream_f32.reshape(-1)
    rem = flat.shape[0] % _LANES
    if rem:
        # TODO(synk): this pad copies the whole stream in HBM; keep inputs
        # lane-aligned upstream (numel a multiple of 64 complex) to stay at
        # the streaming roofline.
        flat = jnp.pad(flat, (0, _LANES - rem))
    return flat.reshape(-1, _LANES)


@jax.jit
def complex_vae_loss(x, recon_x, mu, sigma, delta, kld_weight):
    """ComplexVAELoss.forward.

    x, recon_x : complex64, any shape (e.g. NCHW)
    mu, delta  : complex64, (B, D)
    sigma      : float32,   (B, D)
    kld_weight : scalar
    Returns (total_loss, recon_loss, kl, mean(mu), mean(sigma), mean(delta)).
    """
    n_complex = int(np.prod(x.shape))

    if _HAS_COMPLEX_BITCAST:
        # zero-copy view of the interleaved (re, im) complex buffers: 2 streams
        streams = (_to_rows(jax.lax.bitcast_convert_type(x, jnp.float32)),
                   _to_rows(jax.lax.bitcast_convert_type(recon_x, jnp.float32)))
    else:
        # planar fallback: 4 streams (one extra wrapper-side copy per tensor)
        streams = (_to_rows(jnp.real(x)), _to_rows(jnp.real(recon_x)),
                   _to_rows(jnp.imag(x)), _to_rows(jnp.imag(recon_x)))
    n_pairs = len(streams) // 2

    mu_r = jnp.real(mu).astype(jnp.float32)
    mu_i = jnp.imag(mu).astype(jnp.float32)
    sig = sigma.astype(jnp.float32)
    dl_r = jnp.real(delta).astype(jnp.float32)
    dl_i = jnp.imag(delta).astype(jnp.float32)
    kw = jnp.asarray(kld_weight, dtype=jnp.float32).reshape((1,))
    B, D = mu_r.shape

    rows = streams[0].shape[0]
    tile_rows = min(_TARGET_TILE_ROWS, rows)
    num_steps = -(-rows // tile_rows)
    mask_tail = (num_steps * tile_rows) != rows
    acc_rows = _ACC_ROWS if tile_rows % _ACC_ROWS == 0 else tile_rows

    plane_spec = pl.BlockSpec((tile_rows, _LANES), lambda i: (i, 0))
    latent_spec = pl.BlockSpec((B, D), lambda i: (0, 0))     # resident in VMEM
    smem_spec = pl.BlockSpec(memory_space=pltpu.MemorySpace.SMEM)

    cost = pl.CostEstimate(
        flops=6 * n_complex + 40 * B * D,
        transcendentals=B * D,                               # jnp.log
        bytes_accessed=16 * n_complex + (5 * B * D + 9) * 4,
    )

    out = pl.pallas_call(
        functools.partial(_vae_loss_kernel, n_pairs, rows,
                          1.0 / float(n_complex), mask_tail),
        out_shape=jax.ShapeDtypeStruct((8,), jnp.float32),
        grid_spec=pltpu.PrefetchScalarGridSpec(
            num_scalar_prefetch=0,
            grid=(num_steps,),
            in_specs=[smem_spec] + [plane_spec] * len(streams)
                     + [latent_spec] * 5,
            out_specs=smem_spec,
            scratch_shapes=[pltpu.VMEM((acc_rows, _LANES), jnp.float32)],
        ),
        compiler_params=pltpu.CompilerParams(
            dimension_semantics=("arbitrary",),    # streaming reduction axis
            vmem_limit_bytes=32 * 1024 * 1024,
        ),
        cost_estimate=cost,
    )(kw, *streams, mu_r, mu_i, sig, dl_r, dl_i)

    total_loss = out[0]
    recon_loss = out[1]
    kl = out[2]
    mean_mu = jax.lax.complex(out[3], out[4])
    mean_sigma = out[5]
    mean_delta = jax.lax.complex(out[6], out[7])
    return total_loss, recon_loss, kl, mean_mu, mean_sigma, mean_delta


def _numpy_reference(x, recon_x, mu, sigma, delta, kld_weight):
    x = np.asarray(x, np.complex128)
    recon_x = np.asarray(recon_x, np.complex128)
    mu = np.asarray(mu, np.complex128)
    sigma = np.asarray(sigma, np.float64)
    delta = np.asarray(delta, np.complex128)
    recon = np.mean(np.abs(x - recon_x) ** 2)
    B, D = mu.shape
    denom = sigma ** 2 - np.abs(delta) ** 2
    term = (sigma * (1.0 + np.abs(mu) ** 2) + (delta * (1j * mu) ** 2).real) / denom \
        + 0.5 * np.log(denom)
    kl = (-D + np.sum(term)) / (D * B)
    return (recon + kld_weight * kl, recon, kl, mu.mean(), sigma.mean(),
            delta.mean())


if __name__ == "__main__":
    def make_case(shape, latent_dim):
        B = shape[0]
        ks = jax.random.split(jax.random.PRNGKey(0), 9)

        def cnormal(kr, ki, s, scale=1.0):
            return jax.lax.complex(
                scale * jax.random.normal(kr, s, jnp.float32),
                scale * jax.random.normal(ki, s, jnp.float32))

        x = cnormal(ks[0], ks[1], shape)
        recon_x = cnormal(ks[2], ks[3], shape)
        mu = cnormal(ks[4], ks[5], (B, latent_dim), 0.3)
        # sigma > 0 and |delta| < sigma so that sigma^2 - |delta|^2 > 0
        sigma = 0.5 + jax.random.uniform(ks[6], (B, latent_dim), jnp.float32)
        delta = cnormal(ks[7], ks[8], (B, latent_dim), 0.1)
        return x, recon_x, mu, sigma, delta

    cases = [
        # module-consistent small shapes: complex NCHW (2,4,16,16), latent (2,32)
        ((2, 4, 16, 16), 32, 0.5),
        # exercises multi-step streaming + the masked partial tail tile
        # (5000 rows of 128 on the 2-stream path -> 4096-row tiles, partial tail)
        ((2, 4, 200, 200), 32, 0.25),
    ]
    for shape, latent_dim, kld_weight in cases:
        x, recon_x, mu, sigma, delta = make_case(shape, latent_dim)
        outs = jax.block_until_ready(
            complex_vae_loss(x, recon_x, mu, sigma, delta, kld_weight))
        ref = _numpy_reference(np.asarray(x), np.asarray(recon_x),
                               np.asarray(mu), np.asarray(sigma),
                               np.asarray(delta), kld_weight)
        for got, want in zip(outs, ref):
            np.testing.assert_allclose(np.asarray(got), np.asarray(want),
                                       rtol=1e-4, atol=1e-5)

    print("KERNEL_OK")
</pallas_src>

<mosaic_0001>
module attributes {stable_mosaic.version = 11 : i64} {
  func.func @_vae_loss_kernel(%arg0: i32, %arg1: memref<1xf32, #tpu.memory_space<smem>>, %arg2: memref<16x128xf32, #tpu.memory_space<vmem>>, %arg3: memref<16x128xf32, #tpu.memory_space<vmem>>, %arg4: memref<16x128xf32, #tpu.memory_space<vmem>>, %arg5: memref<16x128xf32, #tpu.memory_space<vmem>>, %arg6: memref<2x32xf32, #tpu.memory_space<vmem>>, %arg7: memref<2x32xf32, #tpu.memory_space<vmem>>, %arg8: memref<2x32xf32, #tpu.memory_space<vmem>>, %arg9: memref<2x32xf32, #tpu.memory_space<vmem>>, %arg10: memref<2x32xf32, #tpu.memory_space<vmem>>, %arg11: memref<8xf32, #tpu.memory_space<smem>>, %arg12: memref<16x128xf32, #tpu.memory_space<vmem>>) attributes {dimension_semantics = [#tpu.dimension_semantics<arbitrary>], iteration_bounds = array<i64: 1>, scalar_prefetch = 0 : i64, scratch_operands = 1 : i64, tpu.core_type = #tpu.core_type<tc>, window_params = [{transform_indices = @transform_0, window_bounds = array<i64: 1>}, {transform_indices = @transform_1, window_bounds = array<i64: 16, 128>}, {transform_indices = @transform_2, window_bounds = array<i64: 16, 128>}, {transform_indices = @transform_3, window_bounds = array<i64: 16, 128>}, {transform_indices = @transform_4, window_bounds = array<i64: 16, 128>}, {pipeline_mode = #tpu.pipeline_mode<synchronous>, transform_indices = @transform_5, window_bounds = array<i64: 2, 32>}, {pipeline_mode = #tpu.pipeline_mode<synchronous>, transform_indices = @transform_6, window_bounds = array<i64: 2, 32>}, {pipeline_mode = #tpu.pipeline_mode<synchronous>, transform_indices = @transform_7, window_bounds = array<i64: 2, 32>}, {pipeline_mode = #tpu.pipeline_mode<synchronous>, transform_indices = @transform_8, window_bounds = array<i64: 2, 32>}, {pipeline_mode = #tpu.pipeline_mode<synchronous>, transform_indices = @transform_9, window_bounds = array<i64: 2, 32>}, {transform_indices = @transform_10, window_bounds = array<i64: 8>}]} {
    %c0_i32 = arith.constant 0 : i32
    %0 = arith.cmpi eq, %arg0, %c0_i32 : i32
    %1 = arith.extui %0 : i1 to i32
    %c0_i32_0 = arith.constant 0 : i32
    %2 = arith.cmpi ne, %1, %c0_i32_0 : i32
    scf.if %2 {
      %cst = arith.constant 0.000000e+00 : f32
      %18 = vector.broadcast %cst : f32 to vector<16x128xf32>
      %c0_14 = arith.constant 0 : index
      %c0_15 = arith.constant 0 : index
      %19 = vector.load %arg12[%c0_14, %c0_15] : memref<16x128xf32, #tpu.memory_space<vmem>>, vector<16x128xf32>
      tpu.vector_store %arg12[%c0_14, %c0_15], %18 {strides = array<i32>} : memref<16x128xf32, #tpu.memory_space<vmem>>, vector<16x128xf32>,
    } else {
    }
    %c0 = arith.constant 0 : index
    %c0_1 = arith.constant 0 : index
    %3 = vector.load %arg2[%c0, %c0_1] : memref<16x128xf32, #tpu.memory_space<vmem>>, vector<16x128xf32>
    %c0_2 = arith.constant 0 : index
    %c0_3 = arith.constant 0 : index
    %4 = vector.load %arg3[%c0_2, %c0_3] : memref<16x128xf32, #tpu.memory_space<vmem>>, vector<16x128xf32>
    %5 = arith.subf %3, %4 : vector<16x128xf32>
    %6 = arith.mulf %5, %5 : vector<16x128xf32>
    %c0_4 = arith.constant 0 : index
    %c0_5 = arith.constant 0 : index
    %7 = vector.load %arg4[%c0_4, %c0_5] : memref<16x128xf32, #tpu.memory_space<vmem>>, vector<16x128xf32>
    %c0_6 = arith.constant 0 : index
    %c0_7 = arith.constant 0 : index
    %8 = vector.load %arg5[%c0_6, %c0_7] : memref<16x128xf32, #tpu.memory_space<vmem>>, vector<16x128xf32>
    %9 = arith.subf %7, %8 : vector<16x128xf32>
    %10 = arith.mulf %9, %9 : vector<16x128xf32>
    %11 = arith.addf %6, %10 : vector<16x128xf32>
    %c0_8 = arith.constant 0 : index
    %c0_9 = arith.constant 0 : index
    %12 = vector.load %arg12[%c0_8, %c0_9] : memref<16x128xf32, #tpu.memory_space<vmem>>, vector<16x128xf32>
    %13 = arith.addf %12, %11 : vector<16x128xf32>
    %c0_10 = arith.constant 0 : index
    %c0_11 = arith.constant 0 : index
    %14 = vector.load %arg12[%c0_10, %c0_11] : memref<16x128xf32, #tpu.memory_space<vmem>>, vector<16x128xf32>
    tpu.vector_store %arg12[%c0_10, %c0_11], %13 {strides = array<i32>} : memref<16x128xf32, #tpu.memory_space<vmem>>, vector<16x128xf32>,
    %c0_i32_12 = arith.constant 0 : i32
    %15 = arith.cmpi eq, %arg0, %c0_i32_12 : i32
    %16 = arith.extui %15 : i1 to i32
    %c0_i32_13 = arith.constant 0 : i32
    %17 = arith.cmpi ne, %16, %c0_i32_13 : i32
    scf.if %17 {
      %c0_14 = arith.constant 0 : index
      %c0_15 = arith.constant 0 : index
      %18 = vector.load %arg12[%c0_14, %c0_15] : memref<16x128xf32, #tpu.memory_space<vmem>>, vector<16x128xf32>
      %19 = vector.shape_cast %18 : vector<16x128xf32> to vector<1x16x128xf32>
      %cst = arith.constant dense<0.000000e+00> : vector<1xf32>
      %20 = vector.multi_reduction <add>, %19, %cst [1, 2] : vector<1x16x128xf32> to vector<1xf32>
      %21 = vector.shape_cast %20 : vector<1xf32> to vector<1x1x1xf32>
      %22 = vector.extract %21[0, 0, 0] : f32 from vector<1x1x1xf32>
      %cst_16 = arith.constant 4.8828125E-4 : f32
      %23 = arith.mulf %22, %cst_16 : f32
      %c0_17 = arith.constant 0 : index
      %c0_18 = arith.constant 0 : index
      %24 = vector.load %arg6[%c0_17, %c0_18] : memref<2x32xf32, #tpu.memory_space<vmem>>, vector<2x32xf32>
      %c0_19 = arith.constant 0 : index
      %c0_20 = arith.constant 0 : index
      %25 = vector.load %arg7[%c0_19, %c0_20] : memref<2x32xf32, #tpu.memory_space<vmem>>, vector<2x32xf32>
      %c0_21 = arith.constant 0 : index
      %c0_22 = arith.constant 0 : index
      %26 = vector.load %arg8[%c0_21, %c0_22] : memref<2x32xf32, #tpu.memory_space<vmem>>, vector<2x32xf32>
      %c0_23 = arith.constant 0 : index
      %c0_24 = arith.constant 0 : index
      %27 = vector.load %arg9[%c0_23, %c0_24] : memref<2x32xf32, #tpu.memory_space<vmem>>, vector<2x32xf32>
      %c0_25 = arith.constant 0 : index
      %c0_26 = arith.constant 0 : index
      %28 = vector.load %arg10[%c0_25, %c0_26] : memref<2x32xf32, #tpu.memory_space<vmem>>, vector<2x32xf32>
      %29 = arith.mulf %24, %24 : vector<2x32xf32>
      %30 = arith.mulf %25, %25 : vector<2x32xf32>
      %31 = arith.addf %29, %30 : vector<2x32xf32>
      %cst_27 = arith.constant 0.000000e+00 : f32
      %32 = vector.broadcast %cst_27 : f32 to vector<2x32xf32>
      %33 = arith.subf %32, %27 : vector<2x32xf32>
      %34 = arith.subf %29, %30 : vector<2x32xf32>
      %35 = arith.mulf %33, %34 : vector<2x32xf32>
      %cst_28 = arith.constant 2.000000e+00 : f32
      %36 = vector.broadcast %cst_28 : f32 to vector<2x32xf32>
      %37 = arith.mulf %36, %28 : vector<2x32xf32>
      %38 = arith.mulf %24, %25 : vector<2x32xf32>
      %39 = arith.mulf %37, %38 : vector<2x32xf32>
      %40 = arith.addf %35, %39 : vector<2x32xf32>
      %41 = arith.mulf %26, %26 : vector<2x32xf32>
      %42 = arith.mulf %27, %27 : vector<2x32xf32>
      %43 = arith.mulf %28, %28 : vector<2x32xf32>
      %44 = arith.addf %42, %43 : vector<2x32xf32>
      %45 = arith.subf %41, %44 : vector<2x32xf32>
      %cst_29 = arith.constant 1.000000e+00 : f32
      %46 = vector.broadcast %cst_29 : f32 to vector<2x32xf32>
      %47 = arith.addf %46, %31 : vector<2x32xf32>
      %48 = arith.mulf %26, %47 : vector<2x32xf32>
      %49 = arith.addf %48, %40 : vector<2x32xf32>
      %50 = arith.divf %49, %45 : vector<2x32xf32>
      %51 = math.log %45 : vector<2x32xf32>
      %cst_30 = arith.constant 5.000000e-01 : f32
      %52 = vector.broadcast %cst_30 : f32 to vector<2x32xf32>
      %53 = arith.mulf %52, %51 : vector<2x32xf32>
      %54 = arith.addf %50, %53 : vector<2x32xf32>
      %55 = vector.shape_cast %54 : vector<2x32xf32> to vector<1x2x32xf32>
      %cst_31 = arith.constant dense<0.000000e+00> : vector<1xf32>
      %56 = vector.multi_reduction <add>, %55, %cst_31 [1, 2] : vector<1x2x32xf32> to vector<1xf32>
      %57 = vector.shape_cast %56 : vector<1xf32> to vector<1x1x1xf32>
      %58 = vector.extract %57[0, 0, 0] : f32 from vector<1x1x1xf32>
      %cst_32 = arith.constant 3.200000e+01 : f32
      %59 = arith.subf %58, %cst_32 : f32
      %cst_33 = arith.constant 1.562500e-02 : f32
      %60 = arith.mulf %59, %cst_33 : f32
      %c0_34 = arith.constant 0 : index
      %61 = memref.load %arg1[%c0_34] : memref<1xf32, #tpu.memory_space<smem>>
      %62 = arith.mulf %61, %60 : f32
      %63 = arith.addf %23, %62 : f32
      %c0_35 = arith.constant 0 : index
      %64 = memref.load %arg11[%c0_35] : memref<8xf32, #tpu.memory_space<smem>>
      memref.store %63, %arg11[%c0_35] : memref<8xf32, #tpu.memory_space<smem>>
      %c1 = arith.constant 1 : index
      %65 = memref.load %arg11[%c1] : memref<8xf32, #tpu.memory_space<smem>>
      memref.store %23, %arg11[%c1] : memref<8xf32, #tpu.memory_space<smem>>
      %c2 = arith.constant 2 : index
      %66 = memref.load %arg11[%c2] : memref<8xf32, #tpu.memory_space<smem>>
      memref.store %60, %arg11[%c2] : memref<8xf32, #tpu.memory_space<smem>>
      %67 = vector.shape_cast %24 : vector<2x32xf32> to vector<1x2x32xf32>
      %cst_36 = arith.constant dense<0.000000e+00> : vector<1xf32>
      %68 = vector.multi_reduction <add>, %67, %cst_36 [1, 2] : vector<1x2x32xf32> to vector<1xf32>
      %69 = vector.shape_cast %68 : vector<1xf32> to vector<1x1x1xf32>
      %70 = vector.extract %69[0, 0, 0] : f32 from vector<1x1x1xf32>
      %cst_37 = arith.constant 1.562500e-02 : f32
      %71 = arith.mulf %70, %cst_37 : f32
      %c3 = arith.constant 3 : index
      %72 = memref.load %arg11[%c3] : memref<8xf32, #tpu.memory_space<smem>>
      memref.store %71, %arg11[%c3] : memref<8xf32, #tpu.memory_space<smem>>
      %73 = vector.shape_cast %25 : vector<2x32xf32> to vector<1x2x32xf32>
      %cst_38 = arith.constant dense<0.000000e+00> : vector<1xf32>
      %74 = vector.multi_reduction <add>, %73, %cst_38 [1, 2] : vector<1x2x32xf32> to vector<1xf32>
      %75 = vector.shape_cast %74 : vector<1xf32> to vector<1x1x1xf32>
      %76 = vector.extract %75[0, 0, 0] : f32 from vector<1x1x1xf32>
      %cst_39 = arith.constant 1.562500e-02 : f32
      %77 = arith.mulf %76, %cst_39 : f32
      %c4 = arith.constant 4 : index
      %78 = memref.load %arg11[%c4] : memref<8xf32, #tpu.memory_space<smem>>
      memref.store %77, %arg11[%c4] : memref<8xf32, #tpu.memory_space<smem>>
      %79 = vector.shape_cast %26 : vector<2x32xf32> to vector<1x2x32xf32>
      %cst_40 = arith.constant dense<0.000000e+00> : vector<1xf32>
      %80 = vector.multi_reduction <add>, %79, %cst_40 [1, 2] : vector<1x2x32xf32> to vector<1xf32>
      %81 = vector.shape_cast %80 : vector<1xf32> to vector<1x1x1xf32>
      %82 = vector.extract %81[0, 0, 0] : f32 from vector<1x1x1xf32>
      %cst_41 = arith.constant 1.562500e-02 : f32
      %83 = arith.mulf %82, %cst_41 : f32
      %c5 = arith.constant 5 : index
      %84 = memref.load %arg11[%c5] : memref<8xf32, #tpu.memory_space<smem>>
      memref.store %83, %arg11[%c5] : memref<8xf32, #tpu.memory_space<smem>>
      %85 = vector.shape_cast %27 : vector<2x32xf32> to vector<1x2x32xf32>
      %cst_42 = arith.constant dense<0.000000e+00> : vector<1xf32>
      %86 = vector.multi_reduction <add>, %85, %cst_42 [1, 2] : vector<1x2x32xf32> to vector<1xf32>
      %87 = vector.shape_cast %86 : vector<1xf32> to vector<1x1x1xf32>
      %88 = vector.extract %87[0, 0, 0] : f32 from vector<1x1x1xf32>
      %cst_43 = arith.constant 1.562500e-02 : f32
      %89 = arith.mulf %88, %cst_43 : f32
      %c6 = arith.constant 6 : index
      %90 = memref.load %arg11[%c6] : memref<8xf32, #tpu.memory_space<smem>>
      memref.store %89, %arg11[%c6] : memref<8xf32, #tpu.memory_space<smem>>
      %91 = vector.shape_cast %28 : vector<2x32xf32> to vector<1x2x32xf32>
      %cst_44 = arith.constant dense<0.000000e+00> : vector<1xf32>
      %92 = vector.multi_reduction <add>, %91, %cst_44 [1, 2] : vector<1x2x32xf32> to vector<1xf32>
      %93 = vector.shape_cast %92 : vector<1xf32> to vector<1x1x1xf32>
      %94 = vector.extract %93[0, 0, 0] : f32 from vector<1x1x1xf32>
      %cst_45 = arith.constant 1.562500e-02 : f32
      %95 = arith.mulf %94, %cst_45 : f32
      %c7 = arith.constant 7 : index
      %96 = memref.load %arg11[%c7] : memref<8xf32, #tpu.memory_space<smem>>
      memref.store %95, %arg11[%c7] : memref<8xf32, #tpu.memory_space<smem>>
    } else {
    }
    return
  }
  func.func @transform_0(%arg0: i32) -> i32 {
    %c0_i32 = arith.constant 0 : i32
    %c0_i32_0 = arith.constant 0 : i32
    return %c0_i32 : i32
  }
  func.func @transform_1(%arg0: i32) -> (i32, i32) {
    %c0_i32 = arith.constant 0 : i32
    %c0_i32_0 = arith.constant 0 : i32
    return %arg0, %c0_i32 : i32, i32
  }
  func.func @transform_2(%arg0: i32) -> (i32, i32) {
    %c0_i32 = arith.constant 0 : i32
    %c0_i32_0 = arith.constant 0 : i32
    return %arg0, %c0_i32 : i32, i32
  }
  func.func @transform_3(%arg0: i32) -> (i32, i32) {
    %c0_i32 = arith.constant 0 : i32
    %c0_i32_0 = arith.constant 0 : i32
    return %arg0, %c0_i32 : i32, i32
  }
  func.func @transform_4(%arg0: i32) -> (i32, i32) {
    %c0_i32 = arith.constant 0 : i32
    %c0_i32_0 = arith.constant 0 : i32
    return %arg0, %c0_i32 : i32, i32
  }
  func.func @transform_5(%arg0: i32) -> (i32, i32) {
    %c0_i32 = arith.constant 0 : i32
    %c0_i32_0 = arith.constant 0 : i32
    %c0_i32_1 = arith.constant 0 : i32
    return %c0_i32, %c0_i32_0 : i32, i32
  }
  func.func @transform_6(%arg0: i32) -> (i32, i32) {
    %c0_i32 = arith.constant 0 : i32
    %c0_i32_0 = arith.constant 0 : i32
    %c0_i32_1 = arith.constant 0 : i32
    return %c0_i32, %c0_i32_0 : i32, i32
  }
  func.func @transform_7(%arg0: i32) -> (i32, i32) {
    %c0_i32 = arith.constant 0 : i32
    %c0_i32_0 = arith.constant 0 : i32
    %c0_i32_1 = arith.constant 0 : i32
    return %c0_i32, %c0_i32_0 : i32, i32
  }
  func.func @transform_8(%arg0: i32) -> (i32, i32) {
    %c0_i32 = arith.constant 0 : i32
    %c0_i32_0 = arith.constant 0 : i32
    %c0_i32_1 = arith.constant 0 : i32
    return %c0_i32, %c0_i32_0 : i32, i32
  }
  func.func @transform_9(%arg0: i32) -> (i32, i32) {
    %c0_i32 = arith.constant 0 : i32
    %c0_i32_0 = arith.constant 0 : i32
    %c0_i32_1 = arith.constant 0 : i32
    return %c0_i32, %c0_i32_0 : i32, i32
  }
  func.func @transform_10(%arg0: i32) -> i32 {
    %c0_i32 = arith.constant 0 : i32
    %c0_i32_0 = arith.constant 0 : i32
    return %c0_i32 : i32
  }
}

</mosaic_0001>

<llo_original>
// kernel: custom-call.4
$region0: #{custom-call.4}
  %s0 = inlined_call_operand.hbm [shape: c64[2,32], index: 0, kind: input, shape index: {}]
  %s1 = inlined_call_operand.vmem [shape: f32[2,32], index: 1, kind: output, shape index: {}]
  $region1: #{custom-call.4} parent=0
    #allocation0 [shape = 's32[1]{0}', space=sflag, size = 0x4, scoped, tag = 'scoped memory for custom-call.4']
    %2 = vsyncpa [#allocation0], 0
    %s4 = sshll.u32 %s0, 4
    %s5 = int_to_ptr.hbm [resolvable:$true] %s4
    %s6 = sshll.u32 %s1, 4
    %s7 = int_to_ptr.vmem [resolvable:$true] %s6
    %9 = dma.hbm_to_vmem [thread:$0]  %s5, 32, %s7, [#allocation0]
    %11 = dma.done [#allocation0], 32
    %12 = vsyncpa [#allocation0], 1

// kernel: custom-call
$region0: #{custom-call}
  %s0 = inlined_call_operand.hbm [shape: c64[2,4,16,16], index: 0, kind: input, shape index: {}]
  %s1 = inlined_call_operand.vmem [shape: f32[2,4,16,16], index: 1, kind: output, shape index: {}]
  $region1: #{custom-call} parent=0
    #allocation0 [shape = 's32[1]{0}', space=sflag, size = 0x4, scoped, tag = 'scoped memory for custom-call']
    %2 = vsyncpa [#allocation0], 0
    %s4 = sshll.u32 %s0, 4
    %s5 = int_to_ptr.hbm [resolvable:$true] %s4
    %s6 = sshll.u32 %s1, 4
    %s7 = int_to_ptr.vmem [resolvable:$true] %s6
    %9 = dma.hbm_to_vmem [thread:$0]  %s5, 2048, %s7, [#allocation0]
    %11 = dma.done [#allocation0], 2048
    %12 = vsyncpa [#allocation0], 1

// kernel: custom-call.1
$region0: #{custom-call.1}
  %s0 = inlined_call_operand.hbm [shape: c64[2,4,16,16], index: 0, kind: input, shape index: {}]
  %s1 = inlined_call_operand.vmem [shape: f32[2,4,16,16], index: 1, kind: output, shape index: {}]
  %s2 = scalar_lea.hbm %s0, 128
  $region1: #{custom-call.1} parent=0
    #allocation0 [shape = 's32[1]{0}', space=sflag, size = 0x4, scoped, tag = 'scoped memory for custom-call.1']
    %3 = vsyncpa [#allocation0], 0
    %s5 = sshll.u32 %s2, 4
    %s6 = int_to_ptr.hbm [resolvable:$true] %s5
    %s7 = sshll.u32 %s1, 4
    %s8 = int_to_ptr.vmem [resolvable:$true] %s7
    %10 = dma.hbm_to_vmem [thread:$0]  %s6, 2048, %s8, [#allocation0]
    %12 = dma.done [#allocation0], 2048
    %13 = vsyncpa [#allocation0], 1

// kernel: custom-call.5
$region0: #{custom-call.5}
  %s0 = inlined_call_operand.hbm [shape: c64[2,32], index: 0, kind: input, shape index: {}]
  %s1 = inlined_call_operand.vmem [shape: f32[2,32], index: 1, kind: output, shape index: {}]
  %s2 = scalar_lea.hbm %s0, 2
  $region1: #{custom-call.5} parent=0
    #allocation0 [shape = 's32[1]{0}', space=sflag, size = 0x4, scoped, tag = 'scoped memory for custom-call.5']
    %3 = vsyncpa [#allocation0], 0
    %s5 = sshll.u32 %s2, 4
    %s6 = int_to_ptr.hbm [resolvable:$true] %s5
    %s7 = sshll.u32 %s1, 4
    %s8 = int_to_ptr.vmem [resolvable:$true] %s7
    %10 = dma.hbm_to_vmem [thread:$0]  %s6, 32, %s8, [#allocation0]
    %12 = dma.done [#allocation0], 32
    %13 = vsyncpa [#allocation0], 1

// kernel: custom-call.9
$region0: #{custom-call.9}
  #allocation0 [shape = 'u32[8,128]{1,0}', space=vmem, size = 0x1000, scoped, tag = 'scoped memory for custom-call.9']
  #allocation2 [shape = 'u32[8,128]{1,0}', space=vmem, size = 0x1000, scoped, tag = 'scoped memory for custom-call.9']
  %s0 = inlined_call_operand.<no memory space> [shape: f32[], index: 0, kind: input, shape index: {}]
  %s1 = inlined_call_operand.<no memory space> [shape: f32[], index: 1, kind: input, shape index: {}]
  %s2 = inlined_call_operand.hbm [shape: c64[], index: 2, kind: output, shape index: {}]
  %s3 = scalar_lea.hbm %s2, 1
  %v4 = vstv %s0
  %vm5 = vcmask 1040384
  %6 = vst.msk [vmem:[#allocation0] sm:$0xff] %vm5, %v4
  $region1: #{custom-call.9} parent=0
    #allocation1 [shape = 's32[1]{0}', space=sflag, size = 0x4, scoped, tag = 'scoped memory for custom-call.9']
    %7 = vsyncpa [#allocation1], 0
    %s9 = sshll.u32 [#allocation0], 4
    %s10 = int_to_ptr.vmem [resolvable:$true] %s9
    %s11 = sshll.u32 %s2, 4
    %s12 = int_to_ptr.hbm [resolvable:$true] %s11
    %14 = dma.vmem_to_hbm [thread:$0]  %s10, 16, %s12, [#allocation1]
    %16 = dma.done [#allocation1], 16
    %17 = vsyncpa [#allocation1], 1
  %v18 = vstv %s1
  %vm19 = vcmask 1040384
  %20 = vst.msk [vmem:[#allocation2] sm:$0xff] %vm19, %v18
  $region2: #{custom-call.9} parent=0
    #allocation3 [shape = 's32[1]{0}', space=sflag, size = 0x4, scoped, tag = 'scoped memory for custom-call.9']
    %21 = vsyncpa [#allocation3], 0
    %s23 = sshll.u32 [#allocation2], 4
    %s24 = int_to_ptr.vmem [resolvable:$true] %s23
    %s25 = sshll.u32 %s3, 4
    %s26 = int_to_ptr.hbm [resolvable:$true] %s25
    %28 = dma.vmem_to_hbm [thread:$0]  %s24, 16, %s26, [#allocation3]
    %30 = dma.done [#allocation3], 16
    %31 = vsyncpa [#allocation3], 1

// kernel: complex_vae_loss.1
$region0: #{complex_vae_loss.1}
  #allocation0 [shape = 'u32[]', space=smem, size = 0x4, offset = 0x4, fixed_abs, tag = 'smem constant byte address 0x4 - core index']
  #allocation1 [shape = 'u32[72,128]{1,0:T(1,128)}', space=vmem, size = 0x9000, scoped, tag = 'internal scratch']
  #allocation2 [shape = 'f32[16,128]{1,0:T(8,128)}', space=vmem, size = 0x2000, scoped, tag = 'scratch operand']
  #allocation3 [shape = 'f32[1]{0:T(128)S(6)}', space=smem, size = 0x200, scoped, tag = 'scoped memory for complex_vae_loss.1']
  %s0 = inlined_call_operand.<no memory space> [shape: f32[1], index: 0, kind: input, shape index: {}]
  %s1 = inlined_call_operand.vmem [shape: f32[16,128], index: 1, kind: input, shape index: {}]
  %s2 = inlined_call_operand.vmem [shape: f32[16,128], index: 2, kind: input, shape index: {}]
  %s3 = inlined_call_operand.vmem [shape: f32[16,128], index: 3, kind: input, shape index: {}]
  %s4 = inlined_call_operand.vmem [shape: f32[16,128], index: 4, kind: input, shape index: {}]
  %s5 = inlined_call_operand.vmem [shape: f32[2,32], index: 5, kind: input, shape index: {}]
  %s6 = inlined_call_operand.vmem [shape: f32[2,32], index: 6, kind: input, shape index: {}]
  %s7 = inlined_call_operand.vmem [shape: f32[2,32], index: 7, kind: input, shape index: {}]
  %s8 = inlined_call_operand.vmem [shape: f32[2,32], index: 8, kind: input, shape index: {}]
  %s9 = inlined_call_operand.vmem [shape: f32[2,32], index: 9, kind: input, shape index: {}]
  %s10 = inlined_call_operand.vmem [shape: f32[8], index: 10, kind: output, shape index: {}]
  %s11 = sld [smem:[#allocation0]]
  $region58: #{complex_vae_loss.1} parent=0
    _
  %s13 = ssub.s32 1, %s11
  %s14 = scalar_select 0, %s13, %s11
  %15 = sst [smem:[#allocation3]] %s0
  $region1: #{complex_vae_loss.1} parent=0
    #allocation4 [shape = 'u8[512]{0}', space=smem, size = 0x200, scoped, tag = 'output window, operand 0, single buffered']
    #allocation5 [shape = 's32[1]{0}', space=sflag, size = 0x4, scoped, tag = 'scoped memory for complex_vae_loss.1']
    %16 = vsyncpa [#allocation5], 0
    // Predicated region
    $region2: #{complex_vae_loss.1} parent=1 // pred_check
      _
    $region3: #{complex_vae_loss.1} parent=1 // pred_check_branch
      %18 = sbr.rel (0) target = $region5
    $region4: #{complex_vae_loss.1} parent=1 // pred_region
      _
    $region5: #{complex_vae_loss.1} parent=1 // pred_fallthru
      _
    // Predicated region
    $region6: #{complex_vae_loss.1} parent=1 // pred_check
      _
    $region7: #{complex_vae_loss.1} parent=1 // pred_check_branch
      %20 = sbr.rel (0) target = $region9
    $region8: #{complex_vae_loss.1} parent=1 // pred_region
      _
    $region9: #{complex_vae_loss.1} parent=1 // pred_fallthru
      _
    // Predicated region
    $region10: #{complex_vae_loss.1} parent=1 // pred_check
      _
    $region11: #{complex_vae_loss.1} parent=1 // pred_check_branch
      %22 = sbr.rel (0) target = $region13
    $region12: #{complex_vae_loss.1} parent=1 // pred_region
      _
    $region13: #{complex_vae_loss.1} parent=1 // pred_fallthru
      _
    // Predicated region
    $region14: #{complex_vae_loss.1} parent=1 // pred_check
      _
    $region15: #{complex_vae_loss.1} parent=1 // pred_check_branch
      %24 = sbr.rel (0) target = $region17
    $region16: #{complex_vae_loss.1} parent=1 // pred_region
      _
    $region17: #{complex_vae_loss.1} parent=1 // pred_fallthru
      _
    // Predicated region
    $region18: #{complex_vae_loss.1} parent=1 // pred_check
      _
    $region19: #{complex_vae_loss.1} parent=1 // pred_check_branch
      %26 = sbr.rel (0) target = $region21
    $region20: #{complex_vae_loss.1} parent=1 // pred_region
      _
    $region21: #{complex_vae_loss.1} parent=1 // pred_fallthru
      _
    // Predicated region
    $region22: #{complex_vae_loss.1} parent=1 // pred_check
      _
    $region23: #{complex_vae_loss.1} parent=1 // pred_check_branch
      %28 = sbr.rel (0) target = $region25
    $region24: #{complex_vae_loss.1} parent=1 // pred_region
      _
    $region25: #{complex_vae_loss.1} parent=1 // pred_fallthru
      _
    // Predicated region
    $region26: #{complex_vae_loss.1} parent=1 // pred_check
      _
    $region27: #{complex_vae_loss.1} parent=1 // pred_check_branch
      %30 = sbr.rel (0) target = $region29
    $region28: #{complex_vae_loss.1} parent=1 // pred_region
      _
    $region29: #{complex_vae_loss.1} parent=1 // pred_fallthru
      _
    // Predicated region
    $region30: #{complex_vae_loss.1} parent=1 // pred_check
      _
    $region31: #{complex_vae_loss.1} parent=1 // pred_check_branch
      %32 = sbr.rel (0) target = $region33
    $region32: #{complex_vae_loss.1} parent=1 // pred_region
      _
    $region33: #{complex_vae_loss.1} parent=1 // pred_fallthru
      _
    // Predicated region
    $region34: #{complex_vae_loss.1} parent=1 // pred_check
      _
    $region35: #{complex_vae_loss.1} parent=1 // pred_check_branch
      %34 = sbr.rel (0) target = $region37
    $region36: #{complex_vae_loss.1} parent=1 // pred_region
      _
    $region37: #{complex_vae_loss.1} parent=1 // pred_fallthru
      _
    // Predicated region
    $region38: #{complex_vae_loss.1} parent=1 // pred_check
      _
    $region39: #{complex_vae_loss.1} parent=1 // pred_check_branch
      %36 = sbr.rel (0) target = $region41
    $region40: #{complex_vae_loss.1} parent=1 // pred_region
      _
    $region41: #{complex_vae_loss.1} parent=1 // pred_fallthru
      _
    %p37 = scmp.eq.s32.totalorder 0, 0
    // Predicated region
    $region42: #{complex_vae_loss.1} parent=1 // pred_check
      %p38 = pneg %p37
    $region43: #{complex_vae_loss.1} parent=1 // pred_check_branch
      %40 = sbr.rel (%p38) target = $region45
    $region44: #{complex_vae_loss.1} parent=1 // pred_region
      %41 = vst [vmem:[#allocation2] sm:$0xff] 0.0
      %42 = vst [vmem:[#allocation2 + $0x8] sm:$0xff] 0.0
    $region45: #{complex_vae_loss.1} parent=1 // pred_fallthru
      _
    %v43 = vld [vmem:[%s1] sm:$0xff]
    %v44 = vld [vmem:[%s1 + $0x8] sm:$0xff]
    %v45 = vld [vmem:[%s2] sm:$0xff]
    %v46 = vld [vmem:[%s2 + $0x8] sm:$0xff]
    %v47 = vsub.f32 %v43, %v45
    %v48 = vsub.f32 %v44, %v46
    %v49 = vmul.f32 %v47, %v47
    %v50 = vmul.f32 %v48, %v48
    %v51 = vld [vmem:[%s3] sm:$0xff]
    %v52 = vld [vmem:[%s3 + $0x8] sm:$0xff]
    %v53 = vld [vmem:[%s4] sm:$0xff]
    %v54 = vld [vmem:[%s4 + $0x8] sm:$0xff]
    %v55 = vsub.f32 %v51, %v53
    %v56 = vsub.f32 %v52, %v54
    %v57 = vmul.f32 %v55, %v55
    %v58 = vmul.f32 %v56, %v56
    %v59 = vadd.f32 %v49, %v57
    %v60 = vadd.f32 %v50, %v58
    %v61 = vld [vmem:[#allocation2] sm:$0xff]
    %v62 = vld [vmem:[#allocation2 + $0x8] sm:$0xff]
    %v63 = vadd.f32 %v61, %v59
    %v64 = vadd.f32 %v62, %v60
    %65 = vst [vmem:[#allocation2] sm:$0xff] %v63
    %66 = vst [vmem:[#allocation2 + $0x8] sm:$0xff] %v64
    // Predicated region
    $region46: #{complex_vae_loss.1} parent=1 // pred_check
      %p67 = pneg %p37
    $region47: #{complex_vae_loss.1} parent=1 // pred_check_branch
      %69 = sbr.rel (%p67) target = $region49
    $region48: #{complex_vae_loss.1} parent=1 // pred_region
      %v70 = vld [vmem:[#allocation2] sm:$0xff]
      %v71 = vld [vmem:[#allocation2 + $0x8] sm:$0xff]
      %v72 = vadd.f32 %v70, %v71
      %73 = vadd.xlane.f32.xlu0 %v72
      %v74 = vpop.xlane.xlu0 %73
      %v75 = vrot.slane %v74, 4
      %v76 = vadd.f32 %v74, %v75
      %v77 = vrot.slane %v76, 2
      %v78 = vadd.f32 %v76, %v77
      %v79 = vrot.slane %v78, 1
      %v80 = vadd.f32 %v78, %v79
      %s81 = vtos %v80
      %s82 = smul.f32 %s81, 0.00048828125
      %v83 = vld [vmem:[%s5] sm:$0x3]
      %v84 = vld [vmem:[%s6] sm:$0x3]
      %v85 = vld [vmem:[%s7] sm:$0x3]
      %v86 = vld [vmem:[%s8] sm:$0x3]
      %v87 = vld [vmem:[%s9] sm:$0x3]
      %v88 = vmul.f32 %v83, %v83
      %v89 = vmul.f32 %v84, %v84
      %v90 = vadd.f32 %v88, %v89
      %v91 = vsub.f32 0.0, %v86
      %v92 = vsub.f32 %v88, %v89
      %v93 = vmul.f32 %v91, %v92
      %v94 = vmul.f32 %v87, 2.0
      %v95 = vmul.f32 %v83, %v84
      %v96 = vmul.f32 %v94, %v95
      %v97 = vadd.f32 %v93, %v96
      %v98 = vmul.f32 %v85, %v85
      %v99 = vmul.f32 %v86, %v86
      %v100 = vmul.f32 %v87, %v87
      %v101 = vadd.f32 %v99, %v100
      %v102 = vsub.f32 %v98, %v101
      %v103 = vadd.f32 %v90, 1.0
      %v104 = vmul.f32 %v85, %v103
      %v105 = vadd.f32 %v104, %v97
      %v106 = vrcp.pop %v102
      %v107 = vmul.f32 %v102, %v106
      %v108 = vsub.f32 1.0, %v107
      %v109 = vmul.f32 %v106, %v108
      %v110 = vadd.f32 %v106, %v109
      %vm111 = vweird.f32 %v102
      %vm112 = vweird.f32 %v106
      %vm113 = vmor %vm111, %vm112
      %v114 = vsel %vm113, %v106, %v110
      %v115 = vand.u32 2147483647, %v102
      %vm116 = vcmp.eq.f32.partialorder %v115, 8.507059e+37
      %v117 = vand.u32 %v102, 2147483648
      %v118 = vor.u32 1.1754944e-38, %v117
      %v119 = vsel %vm116, %v118, %v114
      %v120 = vmul.f32 %v105, %v119
      %v121 = vlog2.pop %v102
      %v122 = vmul.f32 %v121, 0.6931472
      %v123 = vmul.f32 %v122, 0.5
      %v124 = vadd.f32 %v120, %v123
      %vm125 = vcmask 254976
      %v126 = vsel %vm125, %v124, 0.0
      %127 = vadd.xlane.f32.xlu0 %v126
      %v128 = vpop.xlane.xlu0 %127
      %v129 = vrot.slane %v128, 4
      %v130 = vadd.f32 %v128, %v129
      %v131 = vrot.slane %v130, 2
      %v132 = vadd.f32 %v130, %v131
      %v133 = vrot.slane %v132, 1
      %v134 = vadd.f32 %v132, %v133
      %s135 = vtos %v134
      %s136 = ssub.f32 %s135, 32.0
      %s137 = smul.f32 %s136, 0.015625
      %s138 = sld [smem:[#allocation3]]
      %s139 = smul.f32 %s138, %s137
      %s140 = sadd.f32 %s82, %s139
      %s141 = scalar_lea.smem [#allocation4], 0
      %142 = sst [smem:[%s141]] %s140
      %s143 = scalar_lea.smem [#allocation4], 1
      %144 = sst [smem:[%s143]] %s82
      %s145 = scalar_lea.smem [#allocation4], 2
      %146 = sst [smem:[%s145]] %s137
      %v147 = vsel %vm125, %v83, 0.0
      %148 = vadd.xlane.f32.xlu0 %v147
      %v149 = vpop.xlane.xlu0 %148
      %v150 = vrot.slane %v149, 4
      %v151 = vadd.f32 %v149, %v150
      %v152 = vrot.slane %v151, 2
      %v153 = vadd.f32 %v151, %v152
      %v154 = vrot.slane %v153, 1
      %v155 = vadd.f32 %v153, %v154
      %s156 = vtos %v155
      %s157 = smul.f32 %s156, 0.015625
      %s158 = scalar_lea.smem [#allocation4], 3
      %159 = sst [smem:[%s158]] %s157
      %v160 = vsel %vm125, %v84, 0.0
      %161 = vadd.xlane.f32.xlu0 %v160
      %v162 = vpop.xlane.xlu0 %161
      %v163 = vrot.slane %v162, 4
      %v164 = vadd.f32 %v162, %v163
      %v165 = vrot.slane %v164, 2
      %v166 = vadd.f32 %v164, %v165
      %v167 = vrot.slane %v166, 1
      %v168 = vadd.f32 %v166, %v167
      %s169 = vtos %v168
      %s170 = smul.f32 %s169, 0.015625
      %s171 = scalar_lea.smem [#allocation4], 4
      %172 = sst [smem:[%s171]] %s170
      %v173 = vsel %vm125, %v85, 0.0
      %174 = vadd.xlane.f32.xlu0 %v173
      %v175 = vpop.xlane.xlu0 %174
      %v176 = vrot.slane %v175, 4
      %v177 = vadd.f32 %v175, %v176
      %v178 = vrot.slane %v177, 2
      %v179 = vadd.f32 %v177, %v178
      %v180 = vrot.slane %v179, 1
      %v181 = vadd.f32 %v179, %v180
      %s182 = vtos %v181
      %s183 = smul.f32 %s182, 0.015625
      %s184 = scalar_lea.smem [#allocation4], 5
      %185 = sst [smem:[%s184]] %s183
      %v186 = vsel %vm125, %v86, 0.0
      %187 = vadd.xlane.f32.xlu0 %v186
      %v188 = vpop.xlane.xlu0 %187
      %v189 = vrot.slane %v188, 4
      %v190 = vadd.f32 %v188, %v189
      %v191 = vrot.slane %v190, 2
      %v192 = vadd.f32 %v190, %v191
      %v193 = vrot.slane %v192, 1
      %v194 = vadd.f32 %v192, %v193
      %s195 = vtos %v194
      %s196 = smul.f32 %s195, 0.015625
      %s197 = scalar_lea.smem [#allocation4], 6
      %198 = sst [smem:[%s197]] %s196
      %v199 = vsel %vm125, %v87, 0.0
      %200 = vadd.xlane.f32.xlu0 %v199
      %v201 = vpop.xlane.xlu0 %200
      %v202 = vrot.slane %v201, 4
      %v203 = vadd.f32 %v201, %v202
      %v204 = vrot.slane %v203, 2
      %v205 = vadd.f32 %v203, %v204
      %v206 = vrot.slane %v205, 1
      %v207 = vadd.f32 %v205, %v206
      %s208 = vtos %v207
      %s209 = smul.f32 %s208, 0.015625
      %s210 = scalar_lea.smem [#allocation4], 7
      %211 = sst [smem:[%s210]] %s209
    $region49: #{complex_vae_loss.1} parent=1 // pred_fallthru
      _
    // Predicated region
    $region50: #{complex_vae_loss.1} parent=1 // pred_check
      _
    $region51: #{complex_vae_loss.1} parent=1 // pred_check_branch
      %213 = sbr.rel (0) target = $region53
    $region52: #{complex_vae_loss.1} parent=1 // pred_region
      %215 = vsyncadd [#allocation5], 0
      %s217 = sshll.u32 %s10, 4
      %s218 = int_to_ptr.vmem [resolvable:$true] %s217
      %220 = dma.smem_to_vmem [#allocation4], 16, %s218, [#allocation5]
    $region53: #{complex_vae_loss.1} parent=1 // pred_fallthru
      _
    // Predicated region
    $region54: #{complex_vae_loss.1} parent=1 // pred_check
      _
    $region55: #{complex_vae_loss.1} parent=1 // pred_check_branch
      %222 = sbr.rel (0) target = $region57
    $region56: #{complex_vae_loss.1} parent=1 // pred_region
      %224 = dma.done [#allocation5], 16
    $region57: #{complex_vae_loss.1} parent=1 // pred_fallthru
      _
    %225 = sfence
    %226 = vsyncpa [#allocation5], 1

</llo_original>
